<compile_context>
chip_gen: v6e
topology: v6e:2x2x1
jax: 0.10.0
libtpu: 0.0.40
codegen_flags: <defaults>
</compile_context>

<pallas_src>
import functools

import jax
import jax.numpy as jnp
from jax.experimental import pallas as pl
from jax.experimental.pallas import tpu as pltpu


def _round_up(x, m):
    return (x + m - 1) // m * m


def _mlp_kernel(x_ref, w1_ref, wh_ref, w4_ref, bh_ref, bo_ref, out_ref):
    """Fused 4-layer MLP on one batch tile; bf16 MXU matmuls, f32 accumulate."""
    x = x_ref[...].astype(jnp.bfloat16)

    # Layer 1 (concat already folded into one (d_in, H_pad) weight).
    h = jnp.dot(x, w1_ref[...], preferred_element_type=jnp.float32)
    h = jnp.maximum(h + bh_ref[0:1, :], 0.0)

    # Layer 2.
    h = jnp.dot(h.astype(jnp.bfloat16), wh_ref[0],
                preferred_element_type=jnp.float32)
    h = jnp.maximum(h + bh_ref[1:2, :], 0.0)

    # Layer 3.
    h = jnp.dot(h.astype(jnp.bfloat16), wh_ref[1],
                preferred_element_type=jnp.float32)
    h = jnp.maximum(h + bh_ref[2:3, :], 0.0)

    # Head: only OUT_PAD (128-aligned) lanes -> small lane-dense store.
    y = jnp.dot(h.astype(jnp.bfloat16), w4_ref[...],
                preferred_element_type=jnp.float32)
    out_ref[...] = (y + bo_ref[...]).astype(out_ref.dtype)


def _xavier_uniform(key, fan_in, fan_out, dtype=jnp.float32):
    # Matches torch.nn.init.xavier_uniform_ with gain=1; returned as (in, out).
    limit = float(jnp.sqrt(6.0 / (fan_in + fan_out)))
    return jax.random.uniform(key, (fan_in, fan_out), dtype=dtype,
                              minval=-limit, maxval=limit)


def init_d_network_params(key, num_state, num_actions, hidden_dim=200):
    """Unpadded (in_features, out_features) params (torch layout, zero bias)."""
    d_in = num_state + num_actions
    d_out = (num_state + 1) * 2
    dims = [(d_in, hidden_dim), (hidden_dim, hidden_dim),
            (hidden_dim, hidden_dim), (hidden_dim, d_out)]
    keys = jax.random.split(key, len(dims))
    return [(_xavier_uniform(k, fi, fo), jnp.zeros((1, fo), jnp.float32))
            for k, (fi, fo) in zip(keys, dims)]


def pack_d_network_params(params):
    """One-time padding/stacking into MXU-friendly, kernel-ready tensors."""
    (w1, b1), (w2, b2), (w3, b3), (w4, b4) = params
    d_in = w1.shape[0]
    h = w1.shape[1]
    d_out = w4.shape[1]
    h_pad = _round_up(max(h, 128), 128)
    out_pad = _round_up(max(d_out, 128), 128)

    w1p = jnp.zeros((d_in, h_pad), jnp.float32).at[:, :h].set(w1)
    wh = (jnp.zeros((2, h_pad, h_pad), jnp.float32)
          .at[0, :h, :h].set(w2)
          .at[1, :h, :h].set(w3))
    w4p = jnp.zeros((h_pad, out_pad), jnp.float32).at[:h, :d_out].set(w4)
    bh = (jnp.zeros((3, h_pad), jnp.float32)
          .at[0, :h].set(b1[0])
          .at[1, :h].set(b2[0])
          .at[2, :h].set(b3[0]))
    bo = jnp.zeros((1, out_pad), jnp.float32).at[0, :d_out].set(b4[0])
    # Weights in bf16 (MXU inputs), biases in f32 (exact add).
    return (w1p.astype(jnp.bfloat16), wh.astype(jnp.bfloat16),
            w4p.astype(jnp.bfloat16), bh, bo)


def _choose_batch_tiling(batch, block_rows):
    """Pick (tile_rows, padded_batch, num_tiles) bounding padding to <1 tile."""
    n = max(1, -(-batch // block_rows))
    # v7x has two TensorCores; give the "parallel" batch axis >= 2 grid steps
    # whenever there is enough work to split (harmless on single-TC v5e/v6e).
    if n == 1 and batch >= 512:
        n = 2
    rows = -(-batch // n)
    tb = _round_up(rows, 8)
    # Prefer whole 256x256 (v6e/v7x MXU) or 128x128 (v5e) passes when that
    # costs <= ~12.5% extra padded rows.
    for align in (256, 128):
        cand = _round_up(rows, align)
        if cand * 8 <= tb * 9:
            tb = cand
            break
    return tb, n * tb, n


@functools.partial(jax.jit, static_argnames=("num_state", "block_rows"))
def d_network_forward(state, action, packed_params, *, num_state,
                      block_rows=1024):
    """Returns (mean, log_std) exactly as d_network.forward (f32/bf16 numerics)."""
    w1, wh, w4, bh, bo = packed_params
    state = state.astype(jnp.float32)
    action = action.astype(jnp.float32)

    batch = state.shape[0]
    d_in = state.shape[1] + action.shape[1]
    h_pad = w1.shape[1]
    out_pad = w4.shape[1]
    d_out = 2 * (num_state + 1)

    # Fused concat (tiny: ~d_in*4 bytes/row) so layer 1 is a single matmul.
    x = jnp.concatenate([state, action], axis=-1)

    tb, pb, n_tiles = _choose_batch_tiling(batch, block_rows)
    if pb != batch:
        x = jnp.pad(x, ((0, pb - batch), (0, 0)))

    flops = 2 * pb * h_pad * (d_in + 2 * h_pad + out_pad)
    bytes_accessed = (pb * d_in * 4                               # input
                      + pb * out_pad * 4                          # output slab
                      + 2 * h_pad * (d_in + 2 * h_pad + out_pad)  # bf16 weights
                      + 4 * (3 * h_pad + out_pad))                # f32 biases

    out = pl.pallas_call(
        _mlp_kernel,
        out_shape=jax.ShapeDtypeStruct((pb, out_pad), jnp.float32),
        grid=(n_tiles,),
        in_specs=[
            pl.BlockSpec((tb, d_in), lambda i: (i, 0)),             # x tile
            pl.BlockSpec((d_in, h_pad), lambda i: (0, 0)),          # W1
            pl.BlockSpec((2, h_pad, h_pad), lambda i: (0, 0, 0)),   # W2/W3
            pl.BlockSpec((h_pad, out_pad), lambda i: (0, 0)),       # head
            pl.BlockSpec((3, h_pad), lambda i: (0, 0)),             # hidden biases
            pl.BlockSpec((1, out_pad), lambda i: (0, 0)),           # head bias
        ],
        out_specs=pl.BlockSpec((tb, out_pad), lambda i: (i, 0)),
        compiler_params=pltpu.CompilerParams(
            dimension_semantics=("parallel",)),
        cost_estimate=pl.CostEstimate(
            flops=flops, transcendentals=0, bytes_accessed=bytes_accessed),
    )(x, w1, wh, w4, bh, bo)

    mean = out[:batch, :num_state + 1]
    log_std = out[:batch, num_state + 1:d_out]
    return mean, log_std


# ----------------------------- references ----------------------------------

def _reference_forward_f32(state, action, params, num_state):
    x = jnp.concatenate([state, action], axis=-1).astype(jnp.float32)
    for i, (w, b) in enumerate(params):
        x = x @ w + b
        if i < len(params) - 1:
            x = jnp.maximum(x, 0.0)
    return x[..., :num_state + 1], x[..., num_state + 1:]


def _reference_forward_bf16(state, action, params, num_state):
    # Mirrors the kernel's bf16-matmul / f32-accumulate numerics.
    x = jnp.concatenate([state, action], axis=-1).astype(jnp.float32)
    for i, (w, b) in enumerate(params):
        x = jnp.dot(x.astype(jnp.bfloat16), w.astype(jnp.bfloat16),
                    preferred_element_type=jnp.float32) + b
        if i < len(params) - 1:
            x = jnp.maximum(x, 0.0)
    return x[..., :num_state + 1], x[..., num_state + 1:]


if __name__ == "__main__":
    num_state = 8
    num_actions = 4
    hidden_dim = 32
    batch = 8

    key = jax.random.PRNGKey(0)
    k_params, k_state, k_action = jax.random.split(key, 3)

    params = init_d_network_params(k_params, num_state, num_actions, hidden_dim)
    packed = pack_d_network_params(params)

    state = jax.random.normal(k_state, (batch, num_state), dtype=jnp.float32)
    action = jax.random.normal(k_action, (batch, num_actions), dtype=jnp.float32)

    mean, log_std = d_network_forward(state, action, packed, num_state=num_state)
    jax.block_until_ready((mean, log_std))

    assert mean.shape == (batch, num_state + 1)
    assert log_std.shape == (batch, num_state + 1)

    # Tight check vs. a reference with identical bf16-matmul numerics.
    m_bf, l_bf = _reference_forward_bf16(state, action, params, num_state)
    assert jnp.allclose(mean, m_bf, atol=1e-4, rtol=1e-4)
    assert jnp.allclose(log_std, l_bf, atol=1e-4, rtol=1e-4)

    # Loose semantic check vs. the full-f32 reference (bf16 matmul tolerance).
    m_f32, l_f32 = _reference_forward_f32(state, action, params, num_state)
    assert jnp.allclose(mean, m_f32, atol=1e-1, rtol=1e-1)
    assert jnp.allclose(log_std, l_f32, atol=1e-1, rtol=1e-1)

    # Larger ragged batch: exercises the rebalanced batch grid + padding path.
    batch2 = 300
    k_s2, k_a2 = jax.random.split(jax.random.PRNGKey(1))
    state2 = jax.random.normal(k_s2, (batch2, num_state), dtype=jnp.float32)
    action2 = jax.random.normal(k_a2, (batch2, num_actions), dtype=jnp.float32)
    mean2, log_std2 = d_network_forward(state2, action2, packed,
                                        num_state=num_state, block_rows=128)
    jax.block_until_ready((mean2, log_std2))
    m2_bf, l2_bf = _reference_forward_bf16(state2, action2, params, num_state)
    assert mean2.shape == (batch2, num_state + 1)
    assert log_std2.shape == (batch2, num_state + 1)
    assert jnp.allclose(mean2, m2_bf, atol=1e-4, rtol=1e-4)
    assert jnp.allclose(log_std2, l2_bf, atol=1e-4, rtol=1e-4)

    print("KERNEL_OK")
</pallas_src>

<mosaic_0001>
module attributes {stable_mosaic.version = 11 : i64} {
  func.func @_mlp_kernel(%arg0: i32, %arg1: memref<8x12xf32, #tpu.memory_space<vmem>>, %arg2: memref<12x128xbf16, #tpu.memory_space<vmem>>, %arg3: memref<2x128x128xbf16, #tpu.memory_space<vmem>>, %arg4: memref<128x128xbf16, #tpu.memory_space<vmem>>, %arg5: memref<3x128xf32, #tpu.memory_space<vmem>>, %arg6: memref<1x128xf32, #tpu.memory_space<vmem>>, %arg7: memref<8x128xf32, #tpu.memory_space<vmem>>) attributes {dimension_semantics = [#tpu.dimension_semantics<parallel>], iteration_bounds = array<i64: 1>, scalar_prefetch = 0 : i64, scratch_operands = 0 : i64, tpu.core_type = #tpu.core_type<tc>, window_params = [{transform_indices = @transform_0, window_bounds = array<i64: 8, 12>}, {pipeline_mode = #tpu.pipeline_mode<synchronous>, transform_indices = @transform_1, window_bounds = array<i64: 12, 128>}, {pipeline_mode = #tpu.pipeline_mode<synchronous>, transform_indices = @transform_2, window_bounds = array<i64: 2, 128, 128>}, {pipeline_mode = #tpu.pipeline_mode<synchronous>, transform_indices = @transform_3, window_bounds = array<i64: 128, 128>}, {pipeline_mode = #tpu.pipeline_mode<synchronous>, transform_indices = @transform_4, window_bounds = array<i64: 3, 128>}, {pipeline_mode = #tpu.pipeline_mode<synchronous>, transform_indices = @transform_5, window_bounds = array<i64: 1, 128>}, {transform_indices = @transform_6, window_bounds = array<i64: 8, 128>}]} {
    %c0 = arith.constant 0 : index
    %c0_0 = arith.constant 0 : index
    %0 = vector.load %arg1[%c0, %c0_0] : memref<8x12xf32, #tpu.memory_space<vmem>>, vector<8x12xf32>
    %1 = arith.truncf %0 : vector<8x12xf32> to vector<8x12xbf16>
    %c0_1 = arith.constant 0 : index
    %c0_2 = arith.constant 0 : index
    %2 = vector.load %arg2[%c0_1, %c0_2] : memref<12x128xbf16, #tpu.memory_space<vmem>>, vector<12x128xbf16>
    %cst = arith.constant dense<0.000000e+00> : vector<8x128xf32>
    %3 = tpu.matmul %1, %2, %cst {dimension_numbers = #tpu.dot_dimension_numbers<[1], [0], [0], [1], [0, 0, 1, 1], [], []>} : vector<8x12xbf16>, vector<12x128xbf16>, vector<8x128xf32> -> vector<8x128xf32>
    %c0_3 = arith.constant 0 : index
    %c0_4 = arith.constant 0 : index
    %4 = vector.load %arg5[%c0_3, %c0_4] : memref<3x128xf32, #tpu.memory_space<vmem>>, vector<1x128xf32>
    %5 = vector.broadcast %4 : vector<1x128xf32> to vector<8x128xf32>
    %6 = arith.addf %3, %5 : vector<8x128xf32>
    %cst_5 = arith.constant 0.000000e+00 : f32
    %7 = vector.broadcast %cst_5 : f32 to vector<8x128xf32>
    %8 = arith.maximumf %6, %7 : vector<8x128xf32>
    %9 = arith.truncf %8 : vector<8x128xf32> to vector<8x128xbf16>
    %c0_6 = arith.constant 0 : index
    %c0_7 = arith.constant 0 : index
    %c0_8 = arith.constant 0 : index
    %10 = vector.load %arg3[%c0_6, %c0_7, %c0_8] : memref<2x128x128xbf16, #tpu.memory_space<vmem>>, vector<1x128x128xbf16>
    %11 = vector.shape_cast %10 : vector<1x128x128xbf16> to vector<128x128xbf16>
    %cst_9 = arith.constant dense<0.000000e+00> : vector<8x128xf32>
    %12 = tpu.matmul %9, %11, %cst_9 {dimension_numbers = #tpu.dot_dimension_numbers<[1], [0], [0], [1], [0, 0, 1, 1], [], []>} : vector<8x128xbf16>, vector<128x128xbf16>, vector<8x128xf32> -> vector<8x128xf32>
    %c1 = arith.constant 1 : index
    %c0_10 = arith.constant 0 : index
    %13 = vector.load %arg5[%c1, %c0_10] : memref<3x128xf32, #tpu.memory_space<vmem>>, vector<1x128xf32>
    %14 = vector.broadcast %13 : vector<1x128xf32> to vector<8x128xf32>
    %15 = arith.addf %12, %14 : vector<8x128xf32>
    %cst_11 = arith.constant 0.000000e+00 : f32
    %16 = vector.broadcast %cst_11 : f32 to vector<8x128xf32>
    %17 = arith.maximumf %15, %16 : vector<8x128xf32>
    %18 = arith.truncf %17 : vector<8x128xf32> to vector<8x128xbf16>
    %c1_12 = arith.constant 1 : index
    %c0_13 = arith.constant 0 : index
    %c0_14 = arith.constant 0 : index
    %19 = vector.load %arg3[%c1_12, %c0_13, %c0_14] : memref<2x128x128xbf16, #tpu.memory_space<vmem>>, vector<1x128x128xbf16>
    %20 = vector.shape_cast %19 : vector<1x128x128xbf16> to vector<128x128xbf16>
    %cst_15 = arith.constant dense<0.000000e+00> : vector<8x128xf32>
    %21 = tpu.matmul %18, %20, %cst_15 {dimension_numbers = #tpu.dot_dimension_numbers<[1], [0], [0], [1], [0, 0, 1, 1], [], []>} : vector<8x128xbf16>, vector<128x128xbf16>, vector<8x128xf32> -> vector<8x128xf32>
    %c2 = arith.constant 2 : index
    %c0_16 = arith.constant 0 : index
    %22 = vector.load %arg5[%c2, %c0_16] : memref<3x128xf32, #tpu.memory_space<vmem>>, vector<1x128xf32>
    %23 = vector.broadcast %22 : vector<1x128xf32> to vector<8x128xf32>
    %24 = arith.addf %21, %23 : vector<8x128xf32>
    %cst_17 = arith.constant 0.000000e+00 : f32
    %25 = vector.broadcast %cst_17 : f32 to vector<8x128xf32>
    %26 = arith.maximumf %24, %25 : vector<8x128xf32>
    %27 = arith.truncf %26 : vector<8x128xf32> to vector<8x128xbf16>
    %c0_18 = arith.constant 0 : index
    %c0_19 = arith.constant 0 : index
    %28 = vector.load %arg4[%c0_18, %c0_19] : memref<128x128xbf16, #tpu.memory_space<vmem>>, vector<128x128xbf16>
    %cst_20 = arith.constant dense<0.000000e+00> : vector<8x128xf32>
    %29 = tpu.matmul %27, %28, %cst_20 {dimension_numbers = #tpu.dot_dimension_numbers<[1], [0], [0], [1], [0, 0, 1, 1], [], []>} : vector<8x128xbf16>, vector<128x128xbf16>, vector<8x128xf32> -> vector<8x128xf32>
    %c0_21 = arith.constant 0 : index
    %c0_22 = arith.constant 0 : index
    %30 = vector.load %arg6[%c0_21, %c0_22] : memref<1x128xf32, #tpu.memory_space<vmem>>, vector<1x128xf32>
    %31 = vector.broadcast %30 : vector<1x128xf32> to vector<8x128xf32>
    %32 = arith.addf %29, %31 : vector<8x128xf32>
    %c0_23 = arith.constant 0 : index
    %c0_24 = arith.constant 0 : index
    %33 = vector.load %arg7[%c0_23, %c0_24] : memref<8x128xf32, #tpu.memory_space<vmem>>, vector<8x128xf32>
    tpu.vector_store %arg7[%c0_23, %c0_24], %32 {strides = array<i32>} : memref<8x128xf32, #tpu.memory_space<vmem>>, vector<8x128xf32>,
    return
  }
  func.func @transform_0(%arg0: i32) -> (i32, i32) {
    %c0_i32 = arith.constant 0 : i32
    %c0_i32_0 = arith.constant 0 : i32
    return %arg0, %c0_i32 : i32, i32
  }
  func.func @transform_1(%arg0: i32) -> (i32, i32) {
    %c0_i32 = arith.constant 0 : i32
    %c0_i32_0 = arith.constant 0 : i32
    %c0_i32_1 = arith.constant 0 : i32
    return %c0_i32, %c0_i32_0 : i32, i32
  }
  func.func @transform_2(%arg0: i32) -> (i32, i32, i32) {
    %c0_i32 = arith.constant 0 : i32
    %c0_i32_0 = arith.constant 0 : i32
    %c0_i32_1 = arith.constant 0 : i32
    %c0_i32_2 = arith.constant 0 : i32
    return %c0_i32, %c0_i32_0, %c0_i32_1 : i32, i32, i32
  }
  func.func @transform_3(%arg0: i32) -> (i32, i32) {
    %c0_i32 = arith.constant 0 : i32
    %c0_i32_0 = arith.constant 0 : i32
    %c0_i32_1 = arith.constant 0 : i32
    return %c0_i32, %c0_i32_0 : i32, i32
  }
  func.func @transform_4(%arg0: i32) -> (i32, i32) {
    %c0_i32 = arith.constant 0 : i32
    %c0_i32_0 = arith.constant 0 : i32
    %c0_i32_1 = arith.constant 0 : i32
    return %c0_i32, %c0_i32_0 : i32, i32
  }
  func.func @transform_5(%arg0: i32) -> (i32, i32) {
    %c0_i32 = arith.constant 0 : i32
    %c0_i32_0 = arith.constant 0 : i32
    %c0_i32_1 = arith.constant 0 : i32
    return %c0_i32, %c0_i32_0 : i32, i32
  }
  func.func @transform_6(%arg0: i32) -> (i32, i32) {
    %c0_i32 = arith.constant 0 : i32
    %c0_i32_0 = arith.constant 0 : i32
    return %arg0, %c0_i32 : i32, i32
  }
}

</mosaic_0001>

<llo_original>
// kernel: d_network_forward.1
$region0: #{d_network_forward.1}
  #allocation0 [shape = 'u32[]', space=smem, size = 0x4, offset = 0x4, fixed_abs, tag = 'smem constant byte address 0x4 - core index']
  #allocation1 [shape = 'u32[144,128]{1,0:T(1,128)}', space=vmem, size = 0x12000, scoped, tag = 'internal scratch']
  %s0 = inlined_call_operand.vmem [shape: f32[8,12], index: 0, kind: input, shape index: {}]
  %s1 = inlined_call_operand.vmem [shape: bf16[12,128], index: 1, kind: input, shape index: {}]
  %s2 = inlined_call_operand.hbm [shape: bf16[2,128,128], index: 2, kind: input, shape index: {}]
  %s3 = inlined_call_operand.hbm [shape: bf16[128,128], index: 3, kind: input, shape index: {}]
  %s4 = inlined_call_operand.vmem [shape: f32[3,128], index: 4, kind: input, shape index: {}]
  %s5 = inlined_call_operand.vmem [shape: f32[1,128], index: 5, kind: input, shape index: {}]
  %s6 = inlined_call_operand.vmem [shape: f32[8,128], index: 6, kind: output, shape index: {}]
  %s7 = sld [smem:[#allocation0]]
  $region42: #{d_network_forward.1} parent=0
    _
  %s9 = ssub.s32 1, %s7
  %s10 = scalar_select 0, %s9, %s7
  $region1: #{d_network_forward.1} parent=0
    #allocation2 [shape = 'u8[65536]{0}', space=vmem, size = 0x10000, scoped, tag = 'input window, operand 2, single buffered']
    #allocation3 [shape = 's32[1]{0}', space=sflag, size = 0x4, scoped, tag = 'scoped memory for d_network_forward.1']
    #allocation4 [shape = 'u8[32768]{0}', space=vmem, size = 0x8000, scoped, tag = 'input window, operand 3, single buffered']
    #allocation5 [shape = 's32[1]{0}', space=sflag, size = 0x4, scoped, tag = 'scoped memory for d_network_forward.1']
    %11 = vsyncpa [#allocation3], 0
    %12 = vsyncpa [#allocation5], 0
    // Predicated region
    $region2: #{d_network_forward.1} parent=1 // pred_check
      _
    $region3: #{d_network_forward.1} parent=1 // pred_check_branch
      %14 = sbr.rel (0) target = $region5
    $region4: #{d_network_forward.1} parent=1 // pred_region
      _
    $region5: #{d_network_forward.1} parent=1 // pred_fallthru
      _
    // Predicated region
    $region6: #{d_network_forward.1} parent=1 // pred_check
      _
    $region7: #{d_network_forward.1} parent=1 // pred_check_branch
      %16 = sbr.rel (0) target = $region9
    $region8: #{d_network_forward.1} parent=1 // pred_region
      _
    $region9: #{d_network_forward.1} parent=1 // pred_fallthru
      _
    // Predicated region
    $region10: #{d_network_forward.1} parent=1 // pred_check
      _
    $region11: #{d_network_forward.1} parent=1 // pred_check_branch
      %18 = sbr.rel (0) target = $region13
    $region12: #{d_network_forward.1} parent=1 // pred_region
      %s20 = ssub.s32 2048, 2048
      %21 = vsyncadd [#allocation3], %s20
      %s22 = sshll.u32 [#allocation2], 4
      %s23 = int_to_ptr.vmem [resolvable:$true] %s22
      %28 = dma.hbm_to_vmem [thread:$0]  %s2, 2048, %s23, [#allocation3], 64, 64, 4
    $region13: #{d_network_forward.1} parent=1 // pred_fallthru
      _
    // Predicated region
    $region14: #{d_network_forward.1} parent=1 // pred_check
      _
    $region15: #{d_network_forward.1} parent=1 // pred_check_branch
      %30 = sbr.rel (0) target = $region17
    $region16: #{d_network_forward.1} parent=1 // pred_region
      %s32 = ssub.s32 1024, 1024
      %33 = vsyncadd [#allocation5], %s32
      %s34 = sshll.u32 [#allocation4], 4
      %s35 = int_to_ptr.vmem [resolvable:$true] %s34
      %40 = dma.hbm_to_vmem [thread:$0]  %s3, 1024, %s35, [#allocation5], 64, 64, 4
    $region17: #{d_network_forward.1} parent=1 // pred_fallthru
      _
    // Predicated region
    $region18: #{d_network_forward.1} parent=1 // pred_check
      _
    $region19: #{d_network_forward.1} parent=1 // pred_check_branch
      %42 = sbr.rel (0) target = $region21
    $region20: #{d_network_forward.1} parent=1 // pred_region
      _
    $region21: #{d_network_forward.1} parent=1 // pred_fallthru
      _
    // Predicated region
    $region22: #{d_network_forward.1} parent=1 // pred_check
      _
    $region23: #{d_network_forward.1} parent=1 // pred_check_branch
      %44 = sbr.rel (0) target = $region25
    $region24: #{d_network_forward.1} parent=1 // pred_region
      _
    $region25: #{d_network_forward.1} parent=1 // pred_fallthru
      _
    // Predicated region
    $region26: #{d_network_forward.1} parent=1 // pred_check
      _
    $region27: #{d_network_forward.1} parent=1 // pred_check_branch
      %46 = sbr.rel (0) target = $region29
    $region28: #{d_network_forward.1} parent=1 // pred_region
      %47 = dma.done [#allocation3], 2048
    $region29: #{d_network_forward.1} parent=1 // pred_fallthru
      _
    // Predicated region
    $region30: #{d_network_forward.1} parent=1 // pred_check
      _
    $region31: #{d_network_forward.1} parent=1 // pred_check_branch
      %49 = sbr.rel (0) target = $region33
    $region32: #{d_network_forward.1} parent=1 // pred_region
      %50 = dma.done [#allocation5], 1024
    $region33: #{d_network_forward.1} parent=1 // pred_fallthru
      _
    %v52 = vld [vmem:[%s0] sm:$0xff]
    %v53 = vpack.c.bf16 %v52, %v52
    %v54 = vld [vmem:[%s1] sm:$0xf]
    %v55 = vld [vmem:[%s1 + $0x4] sm:$0x3]
    %v56 = vld [vmem:[%s4] sm:$0x1]
    %v57 = vlaneseq
    %v58 = vshrl.u32 %v57, 7
    %v59 = vsub.s32 0, %v58
    %v60 = vrot.slane %v56, %v59
    %v63 = vunpack.c.l.b16 %v54
    %v64 = vunpack.c.l.b16 %v55
    %v65 = vpack.c.b16 %v64, %v63
    %vm66 = vcmask 97280
    %v68 = vsel %vm66, %v53, 0
    %vm70 = vcmask 1045504
    %v72 = vsel %vm70, %v65, 0
    %74 = vmatprep.subr.bf16.mxu0 0
    %75 = vmatpush1.bf16.msra.mxu0 0
    %76 = vmatprep.subr.bf16.mxu0 0
    %77 = vmatpush1.bf16.msra.mxu0 0
    %78 = vmatprep.subr.bf16.mxu0 0
    %79 = vmatpush1.bf16.msra.mxu0 0
    %80 = vmatprep.subr.bf16.mxu0 0
    %81 = vmatpush1.bf16.msra.mxu0 0
    %82 = vmatprep.subr.bf16.mxu0 0
    %83 = vmatpush1.bf16.msra.mxu0 0
    %84 = vmatprep.subr.bf16.mxu0 0
    %85 = vmatpush1.bf16.msra.mxu0 0
    %86 = vmatprep.subr.bf16.mxu0 0
    %87 = vmatpush1.bf16.msra.mxu0 0
    %88 = vmatprep.subr.bf16.mxu0 0
    %89 = vmatpush1.bf16.msra.mxu0 %v72
    %90 = vmatprep.subr.bf16.mxu0 0
    %91 = vmatpush2.bf16.msra.mxu0 0
    %92 = vmatprep.subr.bf16.mxu0 0
    %93 = vmatpush2.bf16.msra.mxu0 0
    %94 = vmatprep.subr.bf16.mxu0 0
    %95 = vmatpush2.bf16.msra.mxu0 0
    %96 = vmatprep.subr.bf16.mxu0 0
    %97 = vmatpush2.bf16.msra.mxu0 0
    %98 = vmatprep.subr.bf16.mxu0 0
    %99 = vmatpush2.bf16.msra.mxu0 0
    %100 = vmatprep.subr.bf16.mxu0 0
    %101 = vmatpush2.bf16.msra.mxu0 0
    %102 = vmatprep.subr.bf16.mxu0 0
    %103 = vmatpush2.bf16.msra.mxu0 0
    %104 = vmatprep.subr.bf16.mxu0 0
    %105 = vmatpush2.bf16.msra.mxu0 0
    %106 = vmatprep.mubr.bf16.mxu0 0
    %107 = vmatmul.mubr.bf16.gmra.mxu0 %v68
    %v108 = vpop.f32.mrf.mxu0
    %v109 = vadd.f32 %v60, %v108
    %v110 = vpop.f32.mrf.mxu0
    %v111 = vpop.f32.mrf.mxu0
    %v112 = vpop.f32.mrf.mxu0
    %113 = vdwg.mxu0
    %v114 = vmax.f32 %v109, 0.0
    %v115 = vpack.c.bf16 %v114, %v114
    %v116 = vld [vmem:[#allocation2] sm:$0xf]
    %v117 = vld [vmem:[#allocation2 + $0x4] sm:$0xf]
    %v118 = vld [vmem:[#allocation2 + $0x8] sm:$0xf]
    %v119 = vld [vmem:[#allocation2 + $0xc] sm:$0xf]
    %v120 = vld [vmem:[#allocation2 + $0x10] sm:$0xf]
    %v121 = vld [vmem:[#allocation2 + $0x14] sm:$0xf]
    %v122 = vld [vmem:[#allocation2 + $0x18] sm:$0xf]
    %v123 = vld [vmem:[#allocation2 + $0x1c] sm:$0xf]
    %v124 = vld [vmem:[#allocation2 + $0x20] sm:$0xf]
    %v125 = vld [vmem:[#allocation2 + $0x24] sm:$0xf]
    %v126 = vld [vmem:[#allocation2 + $0x28] sm:$0xf]
    %v127 = vld [vmem:[#allocation2 + $0x2c] sm:$0xf]
    %v128 = vld [vmem:[#allocation2 + $0x30] sm:$0xf]
    %v129 = vld [vmem:[#allocation2 + $0x34] sm:$0xf]
    %v130 = vld [vmem:[#allocation2 + $0x38] sm:$0xf]
    %v131 = vld [vmem:[#allocation2 + $0x3c] sm:$0xf]
    %v132 = vld [vmem:[%s4 + $0x1] sm:$0x1]
    %v133 = vlaneseq
    %v134 = vshrl.u32 %v133, 7
    %v135 = vsub.s32 0, %v134
    %v136 = vrot.slane %v132, %v135
    %v153 = vunpack.c.l.b16 %v116
    %v154 = vunpack.c.l.b16 %v117
    %v155 = vunpack.c.l.b16 %v118
    %v156 = vunpack.c.l.b16 %v119
    %v157 = vunpack.c.l.b16 %v120
    %v158 = vunpack.c.l.b16 %v121
    %v159 = vunpack.c.l.b16 %v122
    %v160 = vunpack.c.l.b16 %v123
    %v161 = vunpack.c.l.b16 %v124
    %v162 = vunpack.c.l.b16 %v125
    %v163 = vunpack.c.l.b16 %v126
    %v164 = vunpack.c.l.b16 %v127
    %v165 = vunpack.c.l.b16 %v128
    %v166 = vunpack.c.l.b16 %v129
    %v167 = vunpack.c.l.b16 %v130
    %v168 = vunpack.c.l.b16 %v131
    %v169 = vpack.c.b16 %v154, %v153
    %v170 = vpack.c.b16 %v156, %v155
    %v171 = vpack.c.b16 %v158, %v157
    %v172 = vpack.c.b16 %v160, %v159
    %v173 = vpack.c.b16 %v162, %v161
    %v174 = vpack.c.b16 %v164, %v163
    %v175 = vpack.c.b16 %v166, %v165
    %v176 = vpack.c.b16 %v168, %v167
    %185 = vmatprep.subr.bf16.mxu0 0
    %186 = vmatpush1.bf16.msra.mxu0 %v176
    %187 = vmatprep.subr.bf16.mxu0 0
    %188 = vmatpush1.bf16.msra.mxu0 %v175
    %189 = vmatprep.subr.bf16.mxu0 0
    %190 = vmatpush1.bf16.msra.mxu0 %v174
    %191 = vmatprep.subr.bf16.mxu0 0
    %192 = vmatpush1.bf16.msra.mxu0 %v173
    %193 = vmatprep.subr.bf16.mxu0 0
    %194 = vmatpush1.bf16.msra.mxu0 %v172
    %195 = vmatprep.subr.bf16.mxu0 0
    %196 = vmatpush1.bf16.msra.mxu0 %v171
    %197 = vmatprep.subr.bf16.mxu0 0
    %198 = vmatpush1.bf16.msra.mxu0 %v170
    %199 = vmatprep.subr.bf16.mxu0 0
    %200 = vmatpush1.bf16.msra.mxu0 %v169
    %201 = vmatprep.subr.bf16.mxu0 0
    %202 = vmatpush2.bf16.msra.mxu0 0
    %203 = vmatprep.subr.bf16.mxu0 0
    %204 = vmatpush2.bf16.msra.mxu0 0
    %205 = vmatprep.subr.bf16.mxu0 0
    %206 = vmatpush2.bf16.msra.mxu0 0
    %207 = vmatprep.subr.bf16.mxu0 0
    %208 = vmatpush2.bf16.msra.mxu0 0
    %209 = vmatprep.subr.bf16.mxu0 0
    %210 = vmatpush2.bf16.msra.mxu0 0
    %211 = vmatprep.subr.bf16.mxu0 0
    %212 = vmatpush2.bf16.msra.mxu0 0
    %213 = vmatprep.subr.bf16.mxu0 0
    %214 = vmatpush2.bf16.msra.mxu0 0
    %215 = vmatprep.subr.bf16.mxu0 0
    %216 = vmatpush2.bf16.msra.mxu0 0
    %217 = vmatprep.mubr.bf16.mxu0 0
    %218 = vmatmul.mubr.bf16.gmra.mxu0 %v115
    %v219 = vpop.f32.mrf.mxu0
    %v220 = vadd.f32 %v136, %v219
    %v221 = vpop.f32.mrf.mxu0
    %v222 = vpop.f32.mrf.mxu0
    %v223 = vpop.f32.mrf.mxu0
    %224 = vdwg.mxu0
    %v225 = vmax.f32 %v220, 0.0
    %v226 = vpack.c.bf16 %v225, %v225
    %s227 = scalar_lea.vmem [#allocation2], 64
    %v228 = vld [vmem:[%s227] sm:$0xf]
    %v229 = vld [vmem:[%s227 + $0x4] sm:$0xf]
    %v230 = vld [vmem:[%s227 + $0x8] sm:$0xf]
    %v231 = vld [vmem:[%s227 + $0xc] sm:$0xf]
    %v232 = vld [vmem:[%s227 + $0x10] sm:$0xf]
    %v233 = vld [vmem:[%s227 + $0x14] sm:$0xf]
    %v234 = vld [vmem:[%s227 + $0x18] sm:$0xf]
    %v235 = vld [vmem:[%s227 + $0x1c] sm:$0xf]
    %v236 = vld [vmem:[%s227 + $0x20] sm:$0xf]
    %v237 = vld [vmem:[%s227 + $0x24] sm:$0xf]
    %v238 = vld [vmem:[%s227 + $0x28] sm:$0xf]
    %v239 = vld [vmem:[%s227 + $0x2c] sm:$0xf]
    %v240 = vld [vmem:[%s227 + $0x30] sm:$0xf]
    %v241 = vld [vmem:[%s227 + $0x34] sm:$0xf]
    %v242 = vld [vmem:[%s227 + $0x38] sm:$0xf]
    %v243 = vld [vmem:[%s227 + $0x3c] sm:$0xf]
    %v244 = vld [vmem:[%s4 + $0x2] sm:$0x1]
    %v245 = vlaneseq
    %v246 = vshrl.u32 %v245, 7
    %v247 = vsub.s32 0, %v246
    %v248 = vrot.slane %v244, %v247
    %v265 = vunpack.c.l.b16 %v228
    %v266 = vunpack.c.l.b16 %v229
    %v267 = vunpack.c.l.b16 %v230
    %v268 = vunpack.c.l.b16 %v231
    %v269 = vunpack.c.l.b16 %v232
    %v270 = vunpack.c.l.b16 %v233
    %v271 = vunpack.c.l.b16 %v234
    %v272 = vunpack.c.l.b16 %v235
    %v273 = vunpack.c.l.b16 %v236
    %v274 = vunpack.c.l.b16 %v237
    %v275 = vunpack.c.l.b16 %v238
    %v276 = vunpack.c.l.b16 %v239
    %v277 = vunpack.c.l.b16 %v240
    %v278 = vunpack.c.l.b16 %v241
    %v279 = vunpack.c.l.b16 %v242
    %v280 = vunpack.c.l.b16 %v243
    %v281 = vpack.c.b16 %v266, %v265
    %v282 = vpack.c.b16 %v268, %v267
    %v283 = vpack.c.b16 %v270, %v269
    %v284 = vpack.c.b16 %v272, %v271
    %v285 = vpack.c.b16 %v274, %v273
    %v286 = vpack.c.b16 %v276, %v275
    %v287 = vpack.c.b16 %v278, %v277
    %v288 = vpack.c.b16 %v280, %v279
    %297 = vmatprep.subr.bf16.mxu0 0
    %298 = vmatpush1.bf16.msra.mxu0 %v288
    %299 = vmatprep.subr.bf16.mxu0 0
    %300 = vmatpush1.bf16.msra.mxu0 %v287
    %301 = vmatprep.subr.bf16.mxu0 0
    %302 = vmatpush1.bf16.msra.mxu0 %v286
    %303 = vmatprep.subr.bf16.mxu0 0
    %304 = vmatpush1.bf16.msra.mxu0 %v285
    %305 = vmatprep.subr.bf16.mxu0 0
    %306 = vmatpush1.bf16.msra.mxu0 %v284
    %307 = vmatprep.subr.bf16.mxu0 0
    %308 = vmatpush1.bf16.msra.mxu0 %v283
    %309 = vmatprep.subr.bf16.mxu0 0
    %310 = vmatpush1.bf16.msra.mxu0 %v282
    %311 = vmatprep.subr.bf16.mxu0 0
    %312 = vmatpush1.bf16.msra.mxu0 %v281
    %313 = vmatprep.subr.bf16.mxu0 0
    %314 = vmatpush2.bf16.msra.mxu0 0
    %315 = vmatprep.subr.bf16.mxu0 0
    %316 = vmatpush2.bf16.msra.mxu0 0
    %317 = vmatprep.subr.bf16.mxu0 0
    %318 = vmatpush2.bf16.msra.mxu0 0
    %319 = vmatprep.subr.bf16.mxu0 0
    %320 = vmatpush2.bf16.msra.mxu0 0
    %321 = vmatprep.subr.bf16.mxu0 0
    %322 = vmatpush2.bf16.msra.mxu0 0
    %323 = vmatprep.subr.bf16.mxu0 0
    %324 = vmatpush2.bf16.msra.mxu0 0
    %325 = vmatprep.subr.bf16.mxu0 0
    %326 = vmatpush2.bf16.msra.mxu0 0
    %327 = vmatprep.subr.bf16.mxu0 0
    %328 = vmatpush2.bf16.msra.mxu0 0
    %329 = vmatprep.mubr.bf16.mxu0 0
    %330 = vmatmul.mubr.bf16.gmra.mxu0 %v226
    %v331 = vpop.f32.mrf.mxu0
    %v332 = vadd.f32 %v248, %v331
    %v333 = vpop.f32.mrf.mxu0
    %v334 = vpop.f32.mrf.mxu0
    %v335 = vpop.f32.mrf.mxu0
    %336 = vdwg.mxu0
    %v337 = vmax.f32 %v332, 0.0
    %v338 = vpack.c.bf16 %v337, %v337
    %v339 = vld [vmem:[#allocation4] sm:$0xf]
    %v340 = vld [vmem:[#allocation4 + $0x4] sm:$0xf]
    %v341 = vld [vmem:[#allocation4 + $0x8] sm:$0xf]
    %v342 = vld [vmem:[#allocation4 + $0xc] sm:$0xf]
    %v343 = vld [vmem:[#allocation4 + $0x10] sm:$0xf]
    %v344 = vld [vmem:[#allocation4 + $0x14] sm:$0xf]
    %v345 = vld [vmem:[#allocation4 + $0x18] sm:$0xf]
    %v346 = vld [vmem:[#allocation4 + $0x1c] sm:$0xf]
    %v347 = vld [vmem:[#allocation4 + $0x20] sm:$0xf]
    %v348 = vld [vmem:[#allocation4 + $0x24] sm:$0xf]
    %v349 = vld [vmem:[#allocation4 + $0x28] sm:$0xf]
    %v350 = vld [vmem:[#allocation4 + $0x2c] sm:$0xf]
    %v351 = vld [vmem:[#allocation4 + $0x30] sm:$0xf]
    %v352 = vld [vmem:[#allocation4 + $0x34] sm:$0xf]
    %v353 = vld [vmem:[#allocation4 + $0x38] sm:$0xf]
    %v354 = vld [vmem:[#allocation4 + $0x3c] sm:$0xf]
    %v355 = vld [vmem:[%s5] sm:$0x1]
    %v357 = vlaneseq
    %v358 = vshrl.u32 %v357, 7
    %v359 = vsub.s32 0, %v358
    %v360 = vrot.slane %v355, %v359
    %v378 = vunpack.c.l.b16 %v339
    %v379 = vunpack.c.l.b16 %v340
    %v380 = vunpack.c.l.b16 %v341
    %v381 = vunpack.c.l.b16 %v342
    %v382 = vunpack.c.l.b16 %v343
    %v383 = vunpack.c.l.b16 %v344
    %v384 = vunpack.c.l.b16 %v345
    %v385 = vunpack.c.l.b16 %v346
    %v386 = vunpack.c.l.b16 %v347
    %v387 = vunpack.c.l.b16 %v348
    %v388 = vunpack.c.l.b16 %v349
    %v389 = vunpack.c.l.b16 %v350
    %v390 = vunpack.c.l.b16 %v351
    %v391 = vunpack.c.l.b16 %v352
    %v392 = vunpack.c.l.b16 %v353
    %v393 = vunpack.c.l.b16 %v354
    %v394 = vpack.c.b16 %v379, %v378
    %v395 = vpack.c.b16 %v381, %v380
    %v396 = vpack.c.b16 %v383, %v382
    %v397 = vpack.c.b16 %v385, %v384
    %v398 = vpack.c.b16 %v387, %v386
    %v399 = vpack.c.b16 %v389, %v388
    %v400 = vpack.c.b16 %v391, %v390
    %v401 = vpack.c.b16 %v393, %v392
    %410 = vmatprep.subr.bf16.mxu0 0
    %411 = vmatpush1.bf16.msra.mxu0 %v401
    %412 = vmatprep.subr.bf16.mxu0 0
    %413 = vmatpush1.bf16.msra.mxu0 %v400
    %414 = vmatprep.subr.bf16.mxu0 0
    %415 = vmatpush1.bf16.msra.mxu0 %v399
    %416 = vmatprep.subr.bf16.mxu0 0
    %417 = vmatpush1.bf16.msra.mxu0 %v398
    %418 = vmatprep.subr.bf16.mxu0 0
    %419 = vmatpush1.bf16.msra.mxu0 %v397
    %420 = vmatprep.subr.bf16.mxu0 0
    %421 = vmatpush1.bf16.msra.mxu0 %v396
    %422 = vmatprep.subr.bf16.mxu0 0
    %423 = vmatpush1.bf16.msra.mxu0 %v395
    %424 = vmatprep.subr.bf16.mxu0 0
    %425 = vmatpush1.bf16.msra.mxu0 %v394
    %426 = vmatprep.subr.bf16.mxu0 0
    %427 = vmatpush2.bf16.msra.mxu0 0
    %428 = vmatprep.subr.bf16.mxu0 0
    %429 = vmatpush2.bf16.msra.mxu0 0
    %430 = vmatprep.subr.bf16.mxu0 0
    %431 = vmatpush2.bf16.msra.mxu0 0
    %432 = vmatprep.subr.bf16.mxu0 0
    %433 = vmatpush2.bf16.msra.mxu0 0
    %434 = vmatprep.subr.bf16.mxu0 0
    %435 = vmatpush2.bf16.msra.mxu0 0
    %436 = vmatprep.subr.bf16.mxu0 0
    %437 = vmatpush2.bf16.msra.mxu0 0
    %438 = vmatprep.subr.bf16.mxu0 0
    %439 = vmatpush2.bf16.msra.mxu0 0
    %440 = vmatprep.subr.bf16.mxu0 0
    %441 = vmatpush2.bf16.msra.mxu0 0
    %442 = vmatprep.mubr.bf16.mxu0 0
    %443 = vmatmul.mubr.bf16.gmra.mxu0 %v338
    %v444 = vpop.f32.mrf.mxu0
    %v445 = vadd.f32 %v360, %v444
    %v446 = vpop.f32.mrf.mxu0
    %v447 = vpop.f32.mrf.mxu0
    %v448 = vpop.f32.mrf.mxu0
    %449 = vdwg.mxu0
    %450 = vst [vmem:[%s6] sm:$0xff] %v445
    // Predicated region
    $region34: #{d_network_forward.1} parent=1 // pred_check
      _
    $region35: #{d_network_forward.1} parent=1 // pred_check_branch
      %452 = sbr.rel (0) target = $region37
    $region36: #{d_network_forward.1} parent=1 // pred_region
      _
    $region37: #{d_network_forward.1} parent=1 // pred_fallthru
      _
    // Predicated region
    $region38: #{d_network_forward.1} parent=1 // pred_check
      _
    $region39: #{d_network_forward.1} parent=1 // pred_check_branch
      %454 = sbr.rel (0) target = $region41
    $region40: #{d_network_forward.1} parent=1 // pred_region
      _
    $region41: #{d_network_forward.1} parent=1 // pred_fallthru
      _
    %455 = vsyncpa [#allocation3], 1
    %456 = vsyncpa [#allocation5], 1

</llo_original>
